<compile_context>
chip_gen: v5e
topology: v5e:2x2
jax: 0.10.0
libtpu: 0.0.40
codegen_flags: <defaults>
</compile_context>

<pallas_src>
import math

import jax
import jax.numpy as jnp
from jax.experimental import pallas as pl
from jax.experimental.pallas import tpu as pltpu


def _round_up(v, m):
    return (v + m - 1) // m * m


def _linear_bias_kernel(x_ref, w_ref, b_ref, o_ref):
    # x_ref: (tm, K) bf16, w_ref: (K, Npad) bf16, b_ref: (1, Npad) f32, o_ref: (tm, Npad) f32
    acc = jnp.dot(x_ref[...], w_ref[...], preferred_element_type=jnp.float32)
    o_ref[...] = (acc + b_ref[...]).astype(o_ref.dtype)


def spiral_conv(x, indices, weight, bias, *, tm=256):
    """Pallas SpiralConv forward.

    x:       (bs, n_nodes, in_channels) or (n_nodes, in_channels), float32
    indices: (n_nodes, seq_length) int32
    weight:  (out_channels, in_channels * seq_length) float32
    bias:    (out_channels,) float32
    returns: (bs, n_nodes, out_channels)  (or (n_nodes, out_channels) for 2-D x)
    """
    squeeze_batch = x.ndim == 2
    if squeeze_batch:
        x = x[None]
    bs, _, c = x.shape
    n_nodes, seq = indices.shape
    out_channels, k = weight.shape
    assert k == c * seq, "weight in_features must equal in_channels * seq_length"

    # ---- plain-JAX glue: bf16 cast, node padding, spiral gather ------------------
    x_bf = x.astype(jnp.bfloat16)

    # Shrink the row tile for small meshes; pad the node dim to a tile multiple.
    tm_eff = min(tm, _round_up(n_nodes, 16))           # 16-row granule for bf16 sublanes
    n_nodes_pad = _round_up(n_nodes, tm_eff)
    if n_nodes_pad != n_nodes:
        pad_rows = jnp.zeros((n_nodes_pad - n_nodes, seq), indices.dtype)
        indices_p = jnp.concatenate([indices, pad_rows], axis=0)
    else:
        indices_p = indices

    K = seq * c
    # XLA DMA gather (see module docstring for why it is not fused into the kernel).
    xg = jnp.take(x_bf, indices_p.reshape(-1), axis=1).reshape(bs, n_nodes_pad, K)

    # ---- lane-dense output: pad out_channels to a multiple of 128 -----------------
    n_pad = _round_up(out_channels, 128)
    wt = weight.T.astype(jnp.bfloat16)                  # (K, N)
    if n_pad != out_channels:
        wt = jnp.pad(wt, ((0, 0), (0, n_pad - out_channels)))
        b2 = jnp.pad(bias, (0, n_pad - out_channels)).astype(jnp.float32).reshape(1, n_pad)
    else:
        b2 = bias.astype(jnp.float32).reshape(1, n_pad)

    grid = (bs, n_nodes_pad // tm_eff)

    out = pl.pallas_call(
        _linear_bias_kernel,
        out_shape=jax.ShapeDtypeStruct((bs, n_nodes_pad, n_pad), jnp.float32),
        grid_spec=pltpu.PrefetchScalarGridSpec(
            num_scalar_prefetch=0,
            grid=grid,
            in_specs=[
                # Streamed activations: one (tm, K) tile per (batch, node-tile).
                pl.BlockSpec((None, tm_eff, K), lambda b, i: (b, i, 0)),
                # Weight + bias: constant index_map -> VMEM-resident across the grid.
                pl.BlockSpec((K, n_pad), lambda b, i: (0, 0)),
                pl.BlockSpec((1, n_pad), lambda b, i: (0, 0)),
            ],
            out_specs=pl.BlockSpec((None, tm_eff, n_pad), lambda b, i: (b, i, 0)),
        ),
        compiler_params=pltpu.CompilerParams(
            dimension_semantics=("parallel", "parallel"),
        ),
    )(xg, wt, b2)

    out = out[:, :n_nodes, :out_channels]
    if squeeze_batch:
        out = out[0]
    return out


def init_spiral_conv_params(key, in_channels, out_channels, seq_length):
    """Deterministic init matching reset_parameters(): xavier_uniform weight, zero bias."""
    in_features = in_channels * seq_length
    bound = math.sqrt(6.0 / (in_features + out_channels))
    weight = jax.random.uniform(
        key, (out_channels, in_features), jnp.float32, minval=-bound, maxval=bound
    )
    bias = jnp.zeros((out_channels,), jnp.float32)
    return weight, bias


if __name__ == "__main__":
    # Small shapes consistent with the module's 3-D forward path.
    bs = 2
    n_nodes = 64
    in_channels = 4
    seq_length = 8
    out_channels = 32

    key = jax.random.PRNGKey(0)
    k_x, k_idx, k_w = jax.random.split(key, 3)

    x = jax.random.normal(k_x, (bs, n_nodes, in_channels), jnp.float32)
    indices = jax.random.randint(
        k_idx, (n_nodes, seq_length), minval=0, maxval=n_nodes, dtype=jnp.int32
    )
    weight, bias = init_spiral_conv_params(k_w, in_channels, out_channels, seq_length)

    y = spiral_conv(x, indices, weight, bias)
    y = jax.block_until_ready(y)
    assert y.shape == (bs, n_nodes, out_channels)

    # Reference with the same bf16 operand rounding (f32 accumulation).
    xg_ref = jnp.take(x, indices.reshape(-1), axis=1).reshape(bs, n_nodes, -1)
    xg_bf = xg_ref.astype(jnp.bfloat16).astype(jnp.float32)
    w_bf = weight.astype(jnp.bfloat16).astype(jnp.float32)
    y_ref = xg_bf @ w_bf.T + bias
    assert jnp.allclose(y, y_ref, atol=1e-3, rtol=1e-3), float(jnp.max(jnp.abs(y - y_ref)))

    print("KERNEL_OK")
</pallas_src>

<mosaic_0001>
module attributes {stable_mosaic.version = 11 : i64} {
  func.func @_linear_bias_kernel(%arg0: i32, %arg1: i32, %arg2: memref<1x64x32xbf16, #tpu.memory_space<vmem>>, %arg3: memref<32x128xbf16, #tpu.memory_space<vmem>>, %arg4: memref<1x128xf32, #tpu.memory_space<vmem>>, %arg5: memref<1x64x128xf32, #tpu.memory_space<vmem>>) attributes {dimension_semantics = [#tpu.dimension_semantics<parallel>, #tpu.dimension_semantics<parallel>], iteration_bounds = array<i64: 2, 1>, scalar_prefetch = 0 : i64, scratch_operands = 0 : i64, tpu.core_type = #tpu.core_type<tc>, window_params = [{transform_indices = @transform_0, window_bounds = array<i64: 1, 64, 32>}, {pipeline_mode = #tpu.pipeline_mode<synchronous>, transform_indices = @transform_1, window_bounds = array<i64: 32, 128>}, {pipeline_mode = #tpu.pipeline_mode<synchronous>, transform_indices = @transform_2, window_bounds = array<i64: 1, 128>}, {transform_indices = @transform_3, window_bounds = array<i64: 1, 64, 128>}]} {
    %c0 = arith.constant 0 : index
    %c0_0 = arith.constant 0 : index
    %c0_1 = arith.constant 0 : index
    %0 = vector.load %arg2[%c0, %c0_0, %c0_1] : memref<1x64x32xbf16, #tpu.memory_space<vmem>>, vector<1x64x32xbf16>
    %1 = vector.shape_cast %0 : vector<1x64x32xbf16> to vector<64x32xbf16>
    %c0_2 = arith.constant 0 : index
    %c0_3 = arith.constant 0 : index
    %2 = vector.load %arg3[%c0_2, %c0_3] : memref<32x128xbf16, #tpu.memory_space<vmem>>, vector<32x128xbf16>
    %cst = arith.constant dense<0.000000e+00> : vector<64x128xf32>
    %3 = tpu.matmul %1, %2, %cst {dimension_numbers = #tpu.dot_dimension_numbers<[1], [0], [0], [1], [0, 0, 1, 1], [], []>} : vector<64x32xbf16>, vector<32x128xbf16>, vector<64x128xf32> -> vector<64x128xf32>
    %c0_4 = arith.constant 0 : index
    %c0_5 = arith.constant 0 : index
    %4 = vector.load %arg4[%c0_4, %c0_5] : memref<1x128xf32, #tpu.memory_space<vmem>>, vector<1x128xf32>
    %5 = vector.broadcast %4 : vector<1x128xf32> to vector<64x128xf32>
    %6 = arith.addf %3, %5 : vector<64x128xf32>
    %c0_6 = arith.constant 0 : index
    %c0_7 = arith.constant 0 : index
    %c0_8 = arith.constant 0 : index
    %7 = vector.load %arg5[%c0_6, %c0_7, %c0_8] : memref<1x64x128xf32, #tpu.memory_space<vmem>>, vector<1x64x128xf32>
    %8 = vector.shape_cast %7 : vector<1x64x128xf32> to vector<64x128xf32>
    %9 = vector.shape_cast %6 : vector<64x128xf32> to vector<1x64x128xf32>
    tpu.vector_store %arg5[%c0_6, %c0_7, %c0_8], %9 {strides = array<i32>} : memref<1x64x128xf32, #tpu.memory_space<vmem>>, vector<1x64x128xf32>,
    return
  }
  func.func @transform_0(%arg0: i32, %arg1: i32) -> (i32, i32, i32) {
    %c0_i32 = arith.constant 0 : i32
    %c0_i32_0 = arith.constant 0 : i32
    return %arg0, %arg1, %c0_i32 : i32, i32, i32
  }
  func.func @transform_1(%arg0: i32, %arg1: i32) -> (i32, i32) {
    %c0_i32 = arith.constant 0 : i32
    %c0_i32_0 = arith.constant 0 : i32
    %c0_i32_1 = arith.constant 0 : i32
    return %c0_i32, %c0_i32_0 : i32, i32
  }
  func.func @transform_2(%arg0: i32, %arg1: i32) -> (i32, i32) {
    %c0_i32 = arith.constant 0 : i32
    %c0_i32_0 = arith.constant 0 : i32
    %c0_i32_1 = arith.constant 0 : i32
    return %c0_i32, %c0_i32_0 : i32, i32
  }
  func.func @transform_3(%arg0: i32, %arg1: i32) -> (i32, i32, i32) {
    %c0_i32 = arith.constant 0 : i32
    %c0_i32_0 = arith.constant 0 : i32
    return %arg0, %arg1, %c0_i32 : i32, i32, i32
  }
}

</mosaic_0001>

<llo_original>
// kernel: tpu_custom_call.1
$region0: #{tpu_custom_call.1}
  #allocation0 [shape = 'u32[]', space=smem, size = 0x4, offset = 0x4, fixed_abs, tag = 'smem constant byte address 0x4 - core index']
  #allocation1 [shape = 'u32[72,128]{1,0:T(1,128)}', space=vmem, size = 0x9000, scoped, tag = 'internal scratch']
  %s0 = inlined_call_operand.vmem [shape: bf16[2,64,32], index: 0, kind: input, shape index: {}]
  %s1 = inlined_call_operand.vmem [shape: bf16[32,128], index: 1, kind: input, shape index: {}]
  %s2 = inlined_call_operand.vmem [shape: f32[1,128], index: 2, kind: input, shape index: {}]
  %s3 = inlined_call_operand.hbm [shape: f32[2,64,128], index: 3, kind: output, shape index: {}]
  %s4 = sld [smem:[#allocation0]]
  $region45: #{tpu_custom_call.1} parent=0
    _
  %s6 = ssub.s32 1, %s4
  %s7 = scalar_select 0, %s6, %s4
  $region1: #{tpu_custom_call.1} parent=0
    #allocation2 [shape = 'u8[65536]{0}', space=vmem, size = 0x10000, scoped, tag = 'output window, operand 0']
    #allocation3 [shape = 's32[2]{0}', space=sflag, size = 0x8, scoped, tag = 'scoped memory for tpu_custom_call.1']
    %8 = vsyncpa [#allocation3], 0
    %s9 = scalar_lea.sflag [#allocation3], 1
    %10 = vsyncpa %s9, 0
    loop: start=0, step=1, limit=4
    $region2: #{tpu_custom_call.1} parent=1 // loop_pre_header
      _
    $region3: #{tpu_custom_call.1} parent=1 // loop_header
      %s12 = sphi 0, %s16
      %p13 = scmp.ge.s32.totalorder %s12, 4
      %s19 = sphi 0, %s31
      %s20 = sphi 0, %s27
      %s21 = sphi 0, %s19
      %s22 = sphi 0, %s20
      %s23 = sphi 0, %s21
      %s24 = sphi 0, %s22
      %s36 = sphi 0, %s38
      %s39 = sphi 0, %s36
      %s40 = sphi 0, %s39
      %s56 = sphi 0, %s40
      %s60 = sphi 0, %s60
      %s62 = sphi 0, %s60
      %s63 = sphi 0, %s62
      %s77 = sphi 0, %s63
      %s81 = sphi 0, %s81
      %s83 = sphi 0, %s81
      %s84 = sphi 0, %s83
      %s98 = sphi 0, %s84
      %s106 = sphi 0, %s108
      %s109 = sphi 0, %s106
      %s110 = sphi 0, %s109
      %s126 = sphi 0, %s110
    $region4: #{tpu_custom_call.1} parent=1 // loop_header_branch
      %15 = sbr.rel (%p13) target = $region8
    $region5: #{tpu_custom_call.1} parent=1 // loop_body
      %s17 = ssub.s32 %s12, 1
      %s18 = ssub.s32 %s12, 2
      %s25 = sadd.s32 1, %s20
      %p26 = scmp.ge.s32.totalorder %s25, 1
      %s27 = scalar_select %p26, 0, %s25
      %s28 = sadd.s32 1, %s19
      %s29 = scalar_select %p26, %s28, %s19
      %p30 = scmp.ge.s32.totalorder %s29, 2
      %s31 = scalar_select %p30, 0, %s29
      %s32 = ssub.s32 %s19, %s31
      %s33 = ssub.s32 %s20, %s27
      %s34 = sor.u32 %s32, %s33
      %p35 = scmp.eq.s32.totalorder %s34, 0
      %s37 = sadd.s32 %s36, 1
      %s38 = scalar_select %p35, %s36, %s37
      %p41 = pneg %p35
      %p42 = scmp.eq.s32.totalorder %s12, 1
      %p43 = por %p41, %p42
      %p44 = scmp.ne.s32.totalorder %s36, %s39
      %p45 = scmp.eq.s32.totalorder %s12, 0
      %p46 = por %p44, %p45
      %p47 = scmp.ne.s32.totalorder %s36, %s39
      %p48 = scmp.eq.s32.totalorder %s17, 1
      %p49 = por %p47, %p48
      %p50 = scmp.ne.s32.totalorder %s39, %s40
      %p51 = scmp.eq.s32.totalorder %s17, 0
      %p52 = por %p50, %p51
      %p53 = scmp.ne.s32.totalorder %s39, %s40
      %p54 = scmp.eq.s32.totalorder %s18, 1
      %p55 = por %p53, %p54
      %p57 = scmp.ne.s32.totalorder %s40, %s56
      %p58 = scmp.eq.s32.totalorder %s18, 0
      %p59 = por %p57, %p58
      %s61 = sadd.s32 %s60, 1
      %p64 = scmp.eq.s32.totalorder %s12, 1
      %p65 = scmp.ne.s32.totalorder %s60, %s62
      %p66 = scmp.eq.s32.totalorder %s12, 0
      %p67 = por %p65, %p66
      %p68 = scmp.ne.s32.totalorder %s60, %s62
      %p69 = scmp.eq.s32.totalorder %s17, 1
      %p70 = por %p68, %p69
      %p71 = scmp.ne.s32.totalorder %s62, %s63
      %p72 = scmp.eq.s32.totalorder %s17, 0
      %p73 = por %p71, %p72
      %p74 = scmp.ne.s32.totalorder %s62, %s63
      %p75 = scmp.eq.s32.totalorder %s18, 1
      %p76 = por %p74, %p75
      %p78 = scmp.ne.s32.totalorder %s63, %s77
      %p79 = scmp.eq.s32.totalorder %s18, 0
      %p80 = por %p78, %p79
      %s82 = sadd.s32 %s81, 1
      %p85 = scmp.eq.s32.totalorder %s12, 1
      %p86 = scmp.ne.s32.totalorder %s81, %s83
      %p87 = scmp.eq.s32.totalorder %s12, 0
      %p88 = por %p86, %p87
      %p89 = scmp.ne.s32.totalorder %s81, %s83
      %p90 = scmp.eq.s32.totalorder %s17, 1
      %p91 = por %p89, %p90
      %p92 = scmp.ne.s32.totalorder %s83, %s84
      %p93 = scmp.eq.s32.totalorder %s17, 0
      %p94 = por %p92, %p93
      %p95 = scmp.ne.s32.totalorder %s83, %s84
      %p96 = scmp.eq.s32.totalorder %s18, 1
      %p97 = por %p95, %p96
      %p99 = scmp.ne.s32.totalorder %s84, %s98
      %p100 = scmp.eq.s32.totalorder %s18, 0
      %p101 = por %p99, %p100
      %s102 = ssub.s32 %s19, %s31
      %s103 = ssub.s32 %s20, %s27
      %s104 = sor.u32 %s102, %s103
      %p105 = scmp.eq.s32.totalorder %s104, 0
      %s107 = sadd.s32 %s106, 1
      %s108 = scalar_select %p105, %s106, %s107
      %p111 = pneg %p105
      %p112 = scmp.eq.s32.totalorder %s12, 1
      %p113 = por %p111, %p112
      %p114 = scmp.ne.s32.totalorder %s106, %s109
      %p115 = scmp.eq.s32.totalorder %s12, 0
      %p116 = por %p114, %p115
      %p117 = scmp.ne.s32.totalorder %s106, %s109
      %p118 = scmp.eq.s32.totalorder %s17, 1
      %p119 = por %p117, %p118
      %p120 = scmp.ne.s32.totalorder %s109, %s110
      %p121 = scmp.eq.s32.totalorder %s17, 0
      %p122 = por %p120, %p121
      %p123 = scmp.ne.s32.totalorder %s109, %s110
      %p124 = scmp.eq.s32.totalorder %s18, 1
      %p125 = por %p123, %p124
      %p127 = scmp.ne.s32.totalorder %s110, %s126
      %p128 = scmp.eq.s32.totalorder %s18, 0
      %p129 = por %p127, %p128
      %p130 = scmp.le.s32.totalorder 1, %s12
      %p131 = scmp.lt.s32.totalorder %s12, 3
      %p132 = pnand %p130, %p131
      %p133 = pneg %p132
      // Predicated region
      $region9: #{tpu_custom_call.1} parent=5 // pred_check
        _
      $region10: #{tpu_custom_call.1} parent=5 // pred_check_branch
        %135 = sbr.rel (%p132) target = $region12
      $region11: #{tpu_custom_call.1} parent=5 // pred_region
        %s136 = ssub.s32 %s12, 1
        // Predicated region
        $region13: #{tpu_custom_call.1} parent=11 // pred_check
          %p137 = pneg %p73
        $region14: #{tpu_custom_call.1} parent=11 // pred_check_branch
          %139 = sbr.rel (%p137) target = $region16
        $region15: #{tpu_custom_call.1} parent=11 // pred_region
          _
        $region16: #{tpu_custom_call.1} parent=11 // pred_fallthru
          _
        // Predicated region
        $region17: #{tpu_custom_call.1} parent=11 // pred_check
          %p140 = pneg %p94
        $region18: #{tpu_custom_call.1} parent=11 // pred_check_branch
          %142 = sbr.rel (%p140) target = $region20
        $region19: #{tpu_custom_call.1} parent=11 // pred_region
          _
        $region20: #{tpu_custom_call.1} parent=11 // pred_fallthru
          _
      $region12: #{tpu_custom_call.1} parent=5 // pred_fallthru
        _
      %p143 = scmp.lt.s32.totalorder %s12, 2
      // Predicated region
      $region21: #{tpu_custom_call.1} parent=5 // pred_check
        %p144 = pneg %p143
      $region22: #{tpu_custom_call.1} parent=5 // pred_check_branch
        %146 = sbr.rel (%p144) target = $region24
      $region23: #{tpu_custom_call.1} parent=5 // pred_region
        // Predicated region
        $region25: #{tpu_custom_call.1} parent=23 // pred_check
          %p147 = pneg %p46
        $region26: #{tpu_custom_call.1} parent=23 // pred_check_branch
          %149 = sbr.rel (%p147) target = $region28
        $region27: #{tpu_custom_call.1} parent=23 // pred_region
          %s150 = smul.u32 8, %s20
          %p151 = scmp.lt.s32.totalorder %s19, 1
          %s152 = scalar_select %p151, %s19, 1
          %p153 = scmp.lt.s32.totalorder %s150, 7
          %s154 = scalar_select %p153, %s150, 7
          %s155 = smul.addr %s152, 8
          %s156 = sadd.s32 %s154, %s155
          %s157 = smul.addr %s156, 4
          %s158 = scalar_lea.vmem %s0, %s157
          %s159 = smul.u32 8, %s20
        $region28: #{tpu_custom_call.1} parent=23 // pred_fallthru
          _
      $region24: #{tpu_custom_call.1} parent=5 // pred_fallthru
        _
      %p160 = scmp.le.s32.totalorder 1, %s12
      %p161 = scmp.lt.s32.totalorder %s12, 3
      %p162 = pnand %p160, %p161
      %p163 = pneg %p162
      // Predicated region
      $region29: #{tpu_custom_call.1} parent=5 // pred_check
        _
      $region30: #{tpu_custom_call.1} parent=5 // pred_check_branch
        %165 = sbr.rel (%p162) target = $region32
      $region31: #{tpu_custom_call.1} parent=5 // pred_region
        %s166 = ssub.s32 %s12, 1
        %s167 = smul.u32 8, %s22
        %p168 = scmp.lt.s32.totalorder %s21, 1
        %s169 = scalar_select %p168, %s21, 1
        %p170 = scmp.lt.s32.totalorder %s167, 7
        %s171 = scalar_select %p170, %s167, 7
        %s172 = smul.addr %s169, 8
        %s173 = sadd.s32 %s171, %s172
        %s174 = smul.addr %s173, 4
        %s175 = scalar_lea.vmem %s0, %s174
        %p176 = pneg %p52
        %p177 = pneg %p49
        %p178 = pneg %p73
        %p179 = pneg %p70
        %p180 = pneg %p94
        %p181 = pneg %p91
        %p182 = pneg %p122
        %p183 = pneg %p119
        %s184 = sand.u32 %s109, 1
        %s185 = scalar_lea.sflag [#allocation3], %s184
        %s186 = sand.u32 %s109, 1
        %s187 = smul.addr %s186, 64
        %s188 = scalar_lea.vmem [#allocation2], %s187
        %s189 = smul.u32 8, %s22
        %p190 = scmp.lt.s32.totalorder %s21, 1
        %s191 = scalar_select %p190, %s21, 1
        %p192 = scmp.lt.s32.totalorder %s189, 7
        %s193 = scalar_select %p192, %s189, 7
        %s194 = smul.addr %s191, 8
        %s195 = sadd.s32 %s193, %s194
        %s196 = smul.addr %s195, 4
        %s197 = scalar_lea.vmem %s0, %s196
        %s198 = smul.u32 8, %s22
        %s199 = smul.u32 8, %s22
        %v201 = vld [vmem:[%s197] sm:$0xf]
        %v202 = vld [vmem:[%s197 + $0x4] sm:$0xf]
        %v203 = vld [vmem:[%s197 + $0x8] sm:$0xf]
        %v204 = vld [vmem:[%s197 + $0xc] sm:$0xf]
        %v205 = vld [vmem:[%s197 + $0x10] sm:$0xf]
        %v206 = vld [vmem:[%s197 + $0x14] sm:$0xf]
        %v207 = vld [vmem:[%s197 + $0x18] sm:$0xf]
        %v208 = vld [vmem:[%s197 + $0x1c] sm:$0xf]
        %v209 = vld [vmem:[%s1] sm:$0xf]
        %v210 = vld [vmem:[%s1 + $0x4] sm:$0xf]
        %v211 = vld [vmem:[%s1 + $0x8] sm:$0xf]
        %v212 = vld [vmem:[%s1 + $0xc] sm:$0xf]
        %v213 = vld [vmem:[%s2] sm:$0x1]
        %v215 = vperm.slane %v213, 0
        %v225 = vunpack.c.l.b16 %v201
        %v226 = vunpack.c.l.b16 %v202
        %v227 = vunpack.c.l.b16 %v203
        %v228 = vunpack.c.l.b16 %v204
        %v229 = vunpack.c.l.b16 %v205
        %v230 = vunpack.c.l.b16 %v206
        %v231 = vunpack.c.l.b16 %v207
        %v232 = vunpack.c.l.b16 %v208
        %v233 = vpack.c.b16 %v226, %v225
        %v234 = vpack.c.b16 %v228, %v227
        %v235 = vpack.c.b16 %v230, %v229
        %v236 = vpack.c.b16 %v232, %v231
        %v241 = vunpack.c.l.b16 %v209
        %v242 = vunpack.c.l.b16 %v210
        %v243 = vunpack.c.l.b16 %v211
        %v244 = vunpack.c.l.b16 %v212
        %v245 = vpack.c.b16 %v242, %v241
        %v246 = vpack.c.b16 %v244, %v243
        %vm249 = vcmask 261120
        %v251 = vsel %vm249, %v233, 0
        %v254 = vsel %vm249, %v234, 0
        %v257 = vsel %vm249, %v235, 0
        %v260 = vsel %vm249, %v236, 0
        %262 = vmatpush.bf16.msra.mxu0 0
        %263 = vmatpush.bf16.msra.mxu0 0
        %264 = vmatpush.bf16.msra.mxu0 0
        %265 = vmatpush.bf16.msra.mxu0 0
        %266 = vmatpush.bf16.msra.mxu0 0
        %267 = vmatpush.bf16.msra.mxu0 0
        %268 = vmatpush.bf16.msra.mxu0 %v246
        %269 = vmatpush.bf16.msra.mxu0 %v245
        %270 = vmatmul.bf16.gmra.mxu0 %v251
        %v271 = vpop.f32.mrf.mxu0
        %v272 = vadd.f32 %v215, %v271
        %v273 = vpop.f32.mrf.mxu0
        %v274 = vadd.f32 %v215, %v273
        %275 = vmatmul.bf16.gmra.mxu0 %v254
        %v276 = vpop.f32.mrf.mxu0
        %v277 = vadd.f32 %v215, %v276
        %v278 = vpop.f32.mrf.mxu0
        %v279 = vadd.f32 %v215, %v278
        %280 = vmatmul.bf16.gmra.mxu0 %v257
        %v281 = vpop.f32.mrf.mxu0
        %v282 = vadd.f32 %v215, %v281
        %v283 = vpop.f32.mrf.mxu0
        %v284 = vadd.f32 %v215, %v283
        %285 = vmatmul.bf16.gmra.mxu0 %v260
        %v286 = vpop.f32.mrf.mxu0
        %v287 = vadd.f32 %v215, %v286
        %v288 = vpop.f32.mrf.mxu0
        %v289 = vadd.f32 %v215, %v288
        %290 = vdwg.mxu0
        %291 = vst [vmem:[%s188] sm:$0xff] %v272
        %292 = vst [vmem:[%s188 + $0x8] sm:$0xff] %v274
        %293 = vst [vmem:[%s188 + $0x10] sm:$0xff] %v277
        %294 = vst [vmem:[%s188 + $0x18] sm:$0xff] %v279
        %295 = vst [vmem:[%s188 + $0x20] sm:$0xff] %v282
        %296 = vst [vmem:[%s188 + $0x28] sm:$0xff] %v284
        %297 = vst [vmem:[%s188 + $0x30] sm:$0xff] %v287
        %298 = vst [vmem:[%s188 + $0x38] sm:$0xff] %v289
        %s299 = sand.u32 %s109, 1
        %s300 = scalar_lea.sflag [#allocation3], %s299
        %s301 = sand.u32 %s109, 1
        %s302 = smul.addr %s301, 64
        %s303 = scalar_lea.vmem [#allocation2], %s302
        // Predicated region
        $region33: #{tpu_custom_call.1} parent=31 // pred_check
          %p304 = pneg %p119
        $region34: #{tpu_custom_call.1} parent=31 // pred_check_branch
          %306 = sbr.rel (%p304) target = $region36
        $region35: #{tpu_custom_call.1} parent=31 // pred_region
          %s307 = smul.u32 8, %s22
          %309 = vsyncadd %s300, 0
          %s310 = smul.addr %s21, 8
          %s311 = sadd.s32 %s307, %s310
          %s312 = smul.addr %s311, 8
          %s313 = scalar_lea.hbm %s3, %s312
          %s314 = sshll.u32 %s303, 4
          %s315 = int_to_ptr.vmem [resolvable:$true] %s314
          %s316 = sshll.u32 %s313, 4
          %s317 = int_to_ptr.hbm [resolvable:$true] %s316
          %322 = dma.vmem_to_hbm [thread:$0]  %s315, 1024, %s317, %s300, 128, 128, 8
        $region36: #{tpu_custom_call.1} parent=31 // pred_fallthru
          _
      $region32: #{tpu_custom_call.1} parent=5 // pred_fallthru
        _
      %p323 = scmp.le.s32.totalorder 2, %s12
      // Predicated region
      $region37: #{tpu_custom_call.1} parent=5 // pred_check
        %p324 = pneg %p323
      $region38: #{tpu_custom_call.1} parent=5 // pred_check_branch
        %326 = sbr.rel (%p324) target = $region40
      $region39: #{tpu_custom_call.1} parent=5 // pred_region
        %s327 = ssub.s32 %s12, 2
        // Predicated region
        $region41: #{tpu_custom_call.1} parent=39 // pred_check
          %p328 = pneg %p125
        $region42: #{tpu_custom_call.1} parent=39 // pred_check_branch
          %330 = sbr.rel (%p328) target = $region44
        $region43: #{tpu_custom_call.1} parent=39 // pred_region
          %s331 = sand.u32 %s110, 1
          %s332 = scalar_lea.sflag [#allocation3], %s331
          %s333 = sand.u32 %s110, 1
          %s334 = smul.addr %s333, 64
          %s335 = scalar_lea.vmem [#allocation2], %s334
          %337 = dma.done %s332, 1024
        $region44: #{tpu_custom_call.1} parent=39 // pred_fallthru
          _
      $region40: #{tpu_custom_call.1} parent=5 // pred_fallthru
        _
    $region6: #{tpu_custom_call.1} parent=1 // loop_footer
      %s16 = sadd.s32 1, %s12
    $region7: #{tpu_custom_call.1} parent=1 // loop_footer_branch
      %11 = sbr.rel target = $region3
    $region8: #{tpu_custom_call.1} parent=1 // loop_exit
      _
    %338 = vsyncpa [#allocation3], 1
    %s339 = scalar_lea.sflag [#allocation3], 1
    %340 = vsyncpa %s339, 1

</llo_original>
